<compile_context>
chip_gen: v5e
topology: v5e:2x2
jax: 0.10.0
libtpu: 0.0.40
codegen_flags: <defaults>
</compile_context>

<pallas_src>
import functools

import jax
import jax.numpy as jnp
from jax import lax
from jax.experimental import pallas as pl
from jax.experimental.pallas import tpu as pltpu


# ----------------------------------------------------------------------------
# Kernel
# ----------------------------------------------------------------------------
def _mlp_kernel(*refs, n_linear, pre_ln, post_ln, add_residual, eps):
    """Fused LayerNorm -> (Linear+ReLU)* -> Linear -> [LayerNorm] -> +residual.

    refs layout:
      x, [A_pre, g_pre, b_pre], (W_i, b_i) * n_linear, [A_post, g_post, b_post], out

    LayerNorm is expressed with a constant averaging matrix A so the same
    kernel works for the lane-packed layout (A block-diagonal, one block per
    packed row group) and for the plain layout (A = full 1/F matrix):
        mu  = h  @ A          # per-group mean broadcast back to every lane
        xc  = h - mu
        var = (xc*xc) @ A     # per-group variance broadcast back
        h   = xc * rsqrt(var + eps) * gamma + beta
    Everything is plain MXU matmuls + VPU elementwise + one EUP rsqrt; no
    cross-lane reshapes are needed anywhere.
    """
    refs = list(refs)
    out_ref = refs[-1]
    x_ref = refs[0]
    idx = 1

    def layer_norm(h):
        nonlocal idx
        a = refs[idx][...]
        g = refs[idx + 1][...]
        b = refs[idx + 2][...]
        idx += 3
        mu = jnp.dot(h, a, preferred_element_type=jnp.float32)
        xc = h - mu
        var = jnp.dot(xc * xc, a, preferred_element_type=jnp.float32)
        return xc * lax.rsqrt(var + eps) * g + b          # rsqrt -> EUP

    h = x_ref[...].astype(jnp.float32)                    # features on lanes

    if pre_ln:
        h = layer_norm(h)

    for li in range(n_linear):
        w = refs[idx][...]                                # (f_in, f_out): no transpose
        b = refs[idx + 1][...]                            # (1, f_out)
        idx += 2
        h = jnp.dot(h, w, preferred_element_type=jnp.float32) + b
        if li < n_linear - 1:                             # ReLU on hidden layers only
            h = jnp.maximum(h, 0.0)

    if post_ln:
        h = layer_norm(h)

    if add_residual:
        # Re-read the (VMEM-resident) input right before the add instead of
        # keeping the f32 copy live across the whole layer stack.
        h = h + x_ref[...].astype(jnp.float32)

    out_ref[...] = h.astype(out_ref.dtype)


# ----------------------------------------------------------------------------
# Parameter packing helpers (run once in the wrapper; tiny arrays)
# ----------------------------------------------------------------------------
def _block_diag(w, pack):
    if pack == 1:
        return w
    fi, fo = w.shape
    out = jnp.zeros((pack * fi, pack * fo), w.dtype)
    for p in range(pack):
        out = out.at[p * fi:(p + 1) * fi, p * fo:(p + 1) * fo].set(w)
    return out


def _group_mean_matrix(f, pack):
    return _block_diag(jnp.full((f, f), 1.0 / f, jnp.float32), pack)


def _tile_vec(v, pack):
    return jnp.tile(jnp.asarray(v, jnp.float32).reshape(1, -1), (1, pack))


def _round_up(v, m):
    return ((v + m - 1) // m) * m


def _row_tile(rows, width_elems, itemsize, target_bytes=1 << 20):
    """Row tile for the streamed (rows, width) blocks.

    Large tiles amortize the ~0.35us per-grid-step overhead (this kernel is
    HBM-bound); when there are enough rows keep >= 2 grid steps so the
    'parallel' grid axis can be sharded across both v7x TensorCores.
    """
    cap = (target_bytes // max(width_elems * itemsize, 1)) // 16 * 16
    cap = max(64, min(cap, 4096))
    if rows > cap:
        return cap
    if rows >= 512:
        return _round_up((rows + 1) // 2, 16)   # exactly 2 grid steps
    return rows                                 # single full-extent block


# ----------------------------------------------------------------------------
# Wrapper
# ----------------------------------------------------------------------------
def slot_attention_mlp(x, params, *, pre_post_ln, add_residual, eps=1e-5,
                       io_dtype=None, interpret=False):
    """Fused Pallas forward pass of SlotAttentionMLP.

    x:      (B, S, n_feat_in)
    params: {'pre_ln': (gamma, beta) | None,
             'layers': [(w, b), ...],   # w in (in, out) layout; last = output Linear
             'post_ln': (gamma, beta) | None}
    io_dtype: optional dtype for the HBM-streamed activations (e.g. bf16);
              all in-kernel math stays f32.
    """
    B, S, F_in = x.shape
    layers = params['layers']
    dims = [F_in] + [w.shape[1] for (w, _) in layers]
    F_out = dims[-1]

    pre_ln = pre_post_ln == 'pre'
    post_ln = pre_post_ln == 'post'
    if pre_ln and params.get('pre_ln') is None:
        raise ValueError("pre_post_ln='pre' requires params['pre_ln']")
    if post_ln and params.get('post_ln') is None:
        raise ValueError("pre_post_ln='post' requires params['post_ln']")
    if add_residual and F_in != F_out:
        raise ValueError(
            f"add_residual requires n_feat_in == n_feat_out, got {F_in} vs {F_out}")

    stream_dtype = io_dtype if io_dtype is not None else x.dtype

    R = B * S
    x2 = x.reshape(R, F_in).astype(stream_dtype)

    # --- lane-dense row packing (free: row-major (R, F) == (R/PACK, PACK*F)) --
    pack = 128 // F_in if (128 % F_in == 0) else 1
    if pack > 1:
        R_pad = _round_up(R, pack)
        if R_pad != R:
            x2 = jnp.pad(x2, ((0, R_pad - R), (0, 0)))
        rows = R_pad // pack
        x_in = x2.reshape(rows, pack * F_in)
    else:
        R_pad = R
        rows = R
        x_in = x2

    in_width = pack * F_in
    out_width = pack * F_out
    in_isize = jnp.dtype(stream_dtype).itemsize

    tr = _row_tile(rows, max(in_width, out_width), in_isize)
    grid = (pl.cdiv(rows, tr),)    # ragged tail handled by Pallas masking

    # --- assemble args / specs ------------------------------------------------
    args = [x_in]
    in_specs = [pl.BlockSpec((tr, in_width), lambda i: (i, 0))]
    const_bytes = 0

    def add_const(arr):
        nonlocal const_bytes
        arr = jnp.asarray(arr, jnp.float32)
        args.append(arr)
        # Full-extent, index_map -> (0, 0): fetched once, VMEM-resident.
        in_specs.append(pl.BlockSpec(arr.shape, lambda i: (0, 0)))
        const_bytes += arr.size * 4

    if pre_ln:
        g, b = params['pre_ln']
        add_const(_group_mean_matrix(F_in, pack))
        add_const(_tile_vec(g, pack))
        add_const(_tile_vec(b, pack))

    for (w, b) in layers:
        add_const(_block_diag(jnp.asarray(w, jnp.float32), pack))
        add_const(_tile_vec(b, pack))

    if post_ln:
        g, b = params['post_ln']
        add_const(_group_mean_matrix(F_out, pack))
        add_const(_tile_vec(g, pack))
        add_const(_tile_vec(b, pack))

    # --- cost estimate / VMEM budget -------------------------------------------
    flops = 2 * R * sum(dims[i] * dims[i + 1] for i in range(len(layers)))
    transcendentals = R * (F_in if pre_ln else 0) + R * (F_out if post_ln else 0)
    bytes_accessed = (R * F_in * in_isize + R * F_out * in_isize + const_bytes)
    cost = pl.CostEstimate(flops=int(flops),
                           transcendentals=int(transcendentals),
                           bytes_accessed=int(bytes_accessed))

    block_bytes = tr * (in_width + out_width) * in_isize
    vmem_limit = int(min(max(4 * block_bytes + 2 * const_bytes + (8 << 20),
                             32 << 20), 64 << 20))

    kernel = functools.partial(
        _mlp_kernel, n_linear=len(layers), pre_ln=pre_ln, post_ln=post_ln,
        add_residual=add_residual, eps=eps)

    out = pl.pallas_call(
        kernel,
        out_shape=jax.ShapeDtypeStruct((rows, out_width), stream_dtype),
        grid_spec=pltpu.PrefetchScalarGridSpec(
            num_scalar_prefetch=0,
            grid=grid,
            in_specs=in_specs,
            out_specs=pl.BlockSpec((tr, out_width), lambda i: (i, 0)),
        ),
        compiler_params=pltpu.CompilerParams(
            dimension_semantics=("parallel",),
            vmem_limit_bytes=vmem_limit,
        ),
        cost_estimate=cost,
        interpret=interpret,
    )(*args)

    out = out.reshape(R_pad, F_out)[:R]
    return out.reshape(B, S, F_out)


# ----------------------------------------------------------------------------
# Pure-JAX reference (mirrors PyTorch SlotAttentionMLP.forward)
# ----------------------------------------------------------------------------
def _reference(x, params, *, pre_post_ln, add_residual, eps=1e-5):
    def ln(h, g, b):
        mu = jnp.mean(h, axis=-1, keepdims=True)
        xc = h - mu
        var = jnp.mean(xc * xc, axis=-1, keepdims=True)
        return xc * lax.rsqrt(var + eps) * g + b

    xf = x.astype(jnp.float32)
    h = xf
    if pre_post_ln == 'pre':
        g, b = params['pre_ln']
        h = ln(h, g, b)
    layers = params['layers']
    for li, (w, bb) in enumerate(layers):
        h = h @ jnp.asarray(w, jnp.float32) + bb
        if li < len(layers) - 1:
            h = jnp.maximum(h, 0.0)
    if pre_post_ln == 'post':
        g, b = params['post_ln']
        h = ln(h, g, b)
    if add_residual:
        h = h + xf
    return h


def _make_params(key, n_feat_in, n_hidden, n_feat_out, n_layers, pre_post_ln):
    dims = [n_feat_in] + [n_hidden] * n_layers + [n_feat_out]
    n_lin = n_layers + 1
    keys = jax.random.split(key, 2 * n_lin + 4)
    layers = []
    for li in range(n_lin):
        fi, fo = dims[li], dims[li + 1]
        w = 0.1 * jax.random.normal(keys[2 * li], (fi, fo), jnp.float32)
        b = 0.1 * jax.random.normal(keys[2 * li + 1], (fo,), jnp.float32)
        layers.append((w, b))
    pre = post = None
    if pre_post_ln == 'pre':
        pre = (1.0 + 0.1 * jax.random.normal(keys[-4], (n_feat_in,), jnp.float32),
               0.1 * jax.random.normal(keys[-3], (n_feat_in,), jnp.float32))
    if pre_post_ln == 'post':
        post = (1.0 + 0.1 * jax.random.normal(keys[-2], (n_feat_out,), jnp.float32),
                0.1 * jax.random.normal(keys[-1], (n_feat_out,), jnp.float32))
    return {'pre_ln': pre, 'layers': layers, 'post_ln': post}


if __name__ == "__main__":
    root = jax.random.PRNGKey(0)

    # (name, B, S, f_in, hidden, f_out, n_layers, ln, residual, io_dtype, atol)
    cases = [
        ("base_pre_ln_residual_f32", 2, 8, 32, 64, 32, 2, 'pre', True, None, 5e-4),
        ("awkward_rows_bf16_io", 3, 173, 32, 64, 32, 2, 'pre', True, jnp.bfloat16, 3e-2),
        ("post_ln_unpacked_path", 2, 9, 24, 48, 24, 1, 'post', True, None, 5e-4),
    ]

    for ci, (name, B, S, fi, hid, fo, nl, ln_mode, res, io_dt, tol) in enumerate(cases):
        k_param, k_x = jax.random.split(jax.random.fold_in(root, ci))
        params = _make_params(k_param, fi, hid, fo, nl, ln_mode)
        x = jax.random.normal(k_x, (B, S, fi), jnp.float32)

        x_io = x.astype(io_dt) if io_dt is not None else x
        out = slot_attention_mlp(x_io, params, pre_post_ln=ln_mode,
                                 add_residual=res, io_dtype=io_dt)
        jax.block_until_ready(out)

        # Reference sees the same (possibly bf16-rounded) input.
        ref = _reference(x_io.astype(jnp.float32), params,
                         pre_post_ln=ln_mode, add_residual=res)

        assert out.shape == (B, S, fo), (name, out.shape)
        err = jnp.max(jnp.abs(out.astype(jnp.float32) - ref))
        assert bool(err <= tol), f"{name}: max |err| = {float(err)} > {tol}"

    print("KERNEL_OK")
</pallas_src>

<mosaic_0001>
module attributes {stable_mosaic.version = 11 : i64} {
  func.func @_mlp_kernel(%arg0: i32, %arg1: memref<4x128xf32, #tpu.memory_space<vmem>>, %arg2: memref<128x128xf32, #tpu.memory_space<vmem>>, %arg3: memref<1x128xf32, #tpu.memory_space<vmem>>, %arg4: memref<1x128xf32, #tpu.memory_space<vmem>>, %arg5: memref<128x256xf32, #tpu.memory_space<vmem>>, %arg6: memref<1x256xf32, #tpu.memory_space<vmem>>, %arg7: memref<256x256xf32, #tpu.memory_space<vmem>>, %arg8: memref<1x256xf32, #tpu.memory_space<vmem>>, %arg9: memref<256x128xf32, #tpu.memory_space<vmem>>, %arg10: memref<1x128xf32, #tpu.memory_space<vmem>>, %arg11: memref<4x128xf32, #tpu.memory_space<vmem>>) attributes {dimension_semantics = [#tpu.dimension_semantics<parallel>], iteration_bounds = array<i64: 1>, scalar_prefetch = 0 : i64, scratch_operands = 0 : i64, tpu.core_type = #tpu.core_type<tc>, window_params = [{transform_indices = @transform_0, window_bounds = array<i64: 4, 128>}, {pipeline_mode = #tpu.pipeline_mode<synchronous>, transform_indices = @transform_1, window_bounds = array<i64: 128, 128>}, {pipeline_mode = #tpu.pipeline_mode<synchronous>, transform_indices = @transform_2, window_bounds = array<i64: 1, 128>}, {pipeline_mode = #tpu.pipeline_mode<synchronous>, transform_indices = @transform_3, window_bounds = array<i64: 1, 128>}, {pipeline_mode = #tpu.pipeline_mode<synchronous>, transform_indices = @transform_4, window_bounds = array<i64: 128, 256>}, {pipeline_mode = #tpu.pipeline_mode<synchronous>, transform_indices = @transform_5, window_bounds = array<i64: 1, 256>}, {pipeline_mode = #tpu.pipeline_mode<synchronous>, transform_indices = @transform_6, window_bounds = array<i64: 256, 256>}, {pipeline_mode = #tpu.pipeline_mode<synchronous>, transform_indices = @transform_7, window_bounds = array<i64: 1, 256>}, {pipeline_mode = #tpu.pipeline_mode<synchronous>, transform_indices = @transform_8, window_bounds = array<i64: 256, 128>}, {pipeline_mode = #tpu.pipeline_mode<synchronous>, transform_indices = @transform_9, window_bounds = array<i64: 1, 128>}, {transform_indices = @transform_10, window_bounds = array<i64: 4, 128>}]} {
    %c0 = arith.constant 0 : index
    %c0_0 = arith.constant 0 : index
    %0 = vector.load %arg1[%c0, %c0_0] : memref<4x128xf32, #tpu.memory_space<vmem>>, vector<4x128xf32>
    %c0_1 = arith.constant 0 : index
    %c0_2 = arith.constant 0 : index
    %1 = vector.load %arg2[%c0_1, %c0_2] : memref<128x128xf32, #tpu.memory_space<vmem>>, vector<128x128xf32>
    %c0_3 = arith.constant 0 : index
    %c0_4 = arith.constant 0 : index
    %2 = vector.load %arg3[%c0_3, %c0_4] : memref<1x128xf32, #tpu.memory_space<vmem>>, vector<1x128xf32>
    %c0_5 = arith.constant 0 : index
    %c0_6 = arith.constant 0 : index
    %3 = vector.load %arg4[%c0_5, %c0_6] : memref<1x128xf32, #tpu.memory_space<vmem>>, vector<1x128xf32>
    %cst = arith.constant dense<0.000000e+00> : vector<4x128xf32>
    %4 = tpu.matmul %0, %1, %cst {dimension_numbers = #tpu.dot_dimension_numbers<[1], [0], [0], [1], [0, 0, 1, 1], [], []>} : vector<4x128xf32>, vector<128x128xf32>, vector<4x128xf32> -> vector<4x128xf32>
    %5 = arith.subf %0, %4 : vector<4x128xf32>
    %6 = arith.mulf %5, %5 : vector<4x128xf32>
    %cst_7 = arith.constant dense<0.000000e+00> : vector<4x128xf32>
    %7 = tpu.matmul %6, %1, %cst_7 {dimension_numbers = #tpu.dot_dimension_numbers<[1], [0], [0], [1], [0, 0, 1, 1], [], []>} : vector<4x128xf32>, vector<128x128xf32>, vector<4x128xf32> -> vector<4x128xf32>
    %cst_8 = arith.constant 9.99999974E-6 : f32
    %8 = vector.broadcast %cst_8 : f32 to vector<4x128xf32>
    %9 = arith.addf %7, %8 : vector<4x128xf32>
    %10 = math.rsqrt %9 : vector<4x128xf32>
    %11 = arith.mulf %5, %10 : vector<4x128xf32>
    %12 = vector.broadcast %2 : vector<1x128xf32> to vector<4x128xf32>
    %13 = arith.mulf %11, %12 : vector<4x128xf32>
    %14 = vector.broadcast %3 : vector<1x128xf32> to vector<4x128xf32>
    %15 = arith.addf %13, %14 : vector<4x128xf32>
    %c0_9 = arith.constant 0 : index
    %c0_10 = arith.constant 0 : index
    %16 = vector.load %arg5[%c0_9, %c0_10] : memref<128x256xf32, #tpu.memory_space<vmem>>, vector<128x256xf32>
    %c0_11 = arith.constant 0 : index
    %c0_12 = arith.constant 0 : index
    %17 = vector.load %arg6[%c0_11, %c0_12] : memref<1x256xf32, #tpu.memory_space<vmem>>, vector<1x256xf32>
    %cst_13 = arith.constant dense<0.000000e+00> : vector<4x256xf32>
    %18 = tpu.matmul %15, %16, %cst_13 {dimension_numbers = #tpu.dot_dimension_numbers<[1], [0], [0], [1], [0, 0, 1, 1], [], []>} : vector<4x128xf32>, vector<128x256xf32>, vector<4x256xf32> -> vector<4x256xf32>
    %19 = vector.broadcast %17 : vector<1x256xf32> to vector<4x256xf32>
    %20 = arith.addf %18, %19 : vector<4x256xf32>
    %cst_14 = arith.constant 0.000000e+00 : f32
    %21 = vector.broadcast %cst_14 : f32 to vector<4x256xf32>
    %22 = arith.maximumf %20, %21 : vector<4x256xf32>
    %c0_15 = arith.constant 0 : index
    %c0_16 = arith.constant 0 : index
    %23 = vector.load %arg7[%c0_15, %c0_16] : memref<256x256xf32, #tpu.memory_space<vmem>>, vector<256x256xf32>
    %c0_17 = arith.constant 0 : index
    %c0_18 = arith.constant 0 : index
    %24 = vector.load %arg8[%c0_17, %c0_18] : memref<1x256xf32, #tpu.memory_space<vmem>>, vector<1x256xf32>
    %cst_19 = arith.constant dense<0.000000e+00> : vector<4x256xf32>
    %25 = tpu.matmul %22, %23, %cst_19 {dimension_numbers = #tpu.dot_dimension_numbers<[1], [0], [0], [1], [0, 0, 1, 1], [], []>} : vector<4x256xf32>, vector<256x256xf32>, vector<4x256xf32> -> vector<4x256xf32>
    %26 = vector.broadcast %24 : vector<1x256xf32> to vector<4x256xf32>
    %27 = arith.addf %25, %26 : vector<4x256xf32>
    %cst_20 = arith.constant 0.000000e+00 : f32
    %28 = vector.broadcast %cst_20 : f32 to vector<4x256xf32>
    %29 = arith.maximumf %27, %28 : vector<4x256xf32>
    %c0_21 = arith.constant 0 : index
    %c0_22 = arith.constant 0 : index
    %30 = vector.load %arg9[%c0_21, %c0_22] : memref<256x128xf32, #tpu.memory_space<vmem>>, vector<256x128xf32>
    %c0_23 = arith.constant 0 : index
    %c0_24 = arith.constant 0 : index
    %31 = vector.load %arg10[%c0_23, %c0_24] : memref<1x128xf32, #tpu.memory_space<vmem>>, vector<1x128xf32>
    %cst_25 = arith.constant dense<0.000000e+00> : vector<4x128xf32>
    %32 = tpu.matmul %29, %30, %cst_25 {dimension_numbers = #tpu.dot_dimension_numbers<[1], [0], [0], [1], [0, 0, 1, 1], [], []>} : vector<4x256xf32>, vector<256x128xf32>, vector<4x128xf32> -> vector<4x128xf32>
    %33 = vector.broadcast %31 : vector<1x128xf32> to vector<4x128xf32>
    %34 = arith.addf %32, %33 : vector<4x128xf32>
    %c0_26 = arith.constant 0 : index
    %c0_27 = arith.constant 0 : index
    %35 = vector.load %arg1[%c0_26, %c0_27] : memref<4x128xf32, #tpu.memory_space<vmem>>, vector<4x128xf32>
    %36 = arith.addf %34, %35 : vector<4x128xf32>
    %c0_28 = arith.constant 0 : index
    %c0_29 = arith.constant 0 : index
    %37 = vector.load %arg11[%c0_28, %c0_29] : memref<4x128xf32, #tpu.memory_space<vmem>>, vector<4x128xf32>
    tpu.vector_store %arg11[%c0_28, %c0_29], %36 {strides = array<i32>} : memref<4x128xf32, #tpu.memory_space<vmem>>, vector<4x128xf32>,
    return
  }
  func.func @transform_0(%arg0: i32) -> (i32, i32) {
    %c0_i32 = arith.constant 0 : i32
    %c0_i32_0 = arith.constant 0 : i32
    return %arg0, %c0_i32 : i32, i32
  }
  func.func @transform_1(%arg0: i32) -> (i32, i32) {
    %c0_i32 = arith.constant 0 : i32
    %c0_i32_0 = arith.constant 0 : i32
    %c0_i32_1 = arith.constant 0 : i32
    return %c0_i32, %c0_i32_0 : i32, i32
  }
  func.func @transform_2(%arg0: i32) -> (i32, i32) {
    %c0_i32 = arith.constant 0 : i32
    %c0_i32_0 = arith.constant 0 : i32
    %c0_i32_1 = arith.constant 0 : i32
    return %c0_i32, %c0_i32_0 : i32, i32
  }
  func.func @transform_3(%arg0: i32) -> (i32, i32) {
    %c0_i32 = arith.constant 0 : i32
    %c0_i32_0 = arith.constant 0 : i32
    %c0_i32_1 = arith.constant 0 : i32
    return %c0_i32, %c0_i32_0 : i32, i32
  }
  func.func @transform_4(%arg0: i32) -> (i32, i32) {
    %c0_i32 = arith.constant 0 : i32
    %c0_i32_0 = arith.constant 0 : i32
    %c0_i32_1 = arith.constant 0 : i32
    return %c0_i32, %c0_i32_0 : i32, i32
  }
  func.func @transform_5(%arg0: i32) -> (i32, i32) {
    %c0_i32 = arith.constant 0 : i32
    %c0_i32_0 = arith.constant 0 : i32
    %c0_i32_1 = arith.constant 0 : i32
    return %c0_i32, %c0_i32_0 : i32, i32
  }
  func.func @transform_6(%arg0: i32) -> (i32, i32) {
    %c0_i32 = arith.constant 0 : i32
    %c0_i32_0 = arith.constant 0 : i32
    %c0_i32_1 = arith.constant 0 : i32
    return %c0_i32, %c0_i32_0 : i32, i32
  }
  func.func @transform_7(%arg0: i32) -> (i32, i32) {
    %c0_i32 = arith.constant 0 : i32
    %c0_i32_0 = arith.constant 0 : i32
    %c0_i32_1 = arith.constant 0 : i32
    return %c0_i32, %c0_i32_0 : i32, i32
  }
  func.func @transform_8(%arg0: i32) -> (i32, i32) {
    %c0_i32 = arith.constant 0 : i32
    %c0_i32_0 = arith.constant 0 : i32
    %c0_i32_1 = arith.constant 0 : i32
    return %c0_i32, %c0_i32_0 : i32, i32
  }
  func.func @transform_9(%arg0: i32) -> (i32, i32) {
    %c0_i32 = arith.constant 0 : i32
    %c0_i32_0 = arith.constant 0 : i32
    %c0_i32_1 = arith.constant 0 : i32
    return %c0_i32, %c0_i32_0 : i32, i32
  }
  func.func @transform_10(%arg0: i32) -> (i32, i32) {
    %c0_i32 = arith.constant 0 : i32
    %c0_i32_0 = arith.constant 0 : i32
    return %arg0, %c0_i32 : i32, i32
  }
}

</mosaic_0001>

<llo_original>
// kernel: tpu_custom_call.1
$region0: #{tpu_custom_call.1}
  #allocation0 [shape = 'u32[]', space=smem, size = 0x4, offset = 0x4, fixed_abs, tag = 'smem constant byte address 0x4 - core index']
  #allocation1 [shape = 'u32[72,128]{1,0:T(1,128)}', space=vmem, size = 0x9000, scoped, tag = 'internal scratch']
  %s0 = inlined_call_operand.hbm [shape: f32[4,128], index: 0, kind: input, shape index: {}]
  %s1 = inlined_call_operand.hbm [shape: f32[128,128], index: 1, kind: input, shape index: {}]
  %s2 = inlined_call_operand.hbm [shape: f32[1,128], index: 2, kind: input, shape index: {}]
  %s3 = inlined_call_operand.hbm [shape: f32[1,128], index: 3, kind: input, shape index: {}]
  %s4 = inlined_call_operand.hbm [shape: f32[128,256], index: 4, kind: input, shape index: {}]
  %s5 = inlined_call_operand.vmem [shape: f32[1,256], index: 5, kind: input, shape index: {}]
  %s6 = inlined_call_operand.hbm [shape: f32[256,256], index: 6, kind: input, shape index: {}]
  %s7 = inlined_call_operand.vmem [shape: f32[1,256], index: 7, kind: input, shape index: {}]
  %s8 = inlined_call_operand.hbm [shape: f32[256,128], index: 8, kind: input, shape index: {}]
  %s9 = inlined_call_operand.vmem [shape: f32[1,128], index: 9, kind: input, shape index: {}]
  %s10 = inlined_call_operand.hbm [shape: f32[4,128], index: 10, kind: output, shape index: {}]
  %s11 = sld [smem:[#allocation0]]
  $region78: #{tpu_custom_call.1} parent=0
    _
  %s13 = ssub.s32 1, %s11
  %s14 = scalar_select 0, %s13, %s11
  $region1: #{tpu_custom_call.1} parent=0
    #allocation2 [shape = 'u8[2048]{0}', space=vmem, size = 0x800, scoped, tag = 'input window, operand 0, single buffered']
    #allocation3 [shape = 's32[1]{0}', space=sflag, size = 0x4, scoped, tag = 'scoped memory for tpu_custom_call.1']
    #allocation4 [shape = 's32[1]{0}', space=sflag, size = 0x4, scoped, tag = 'scoped memory for tpu_custom_call.1']
    #allocation5 [shape = 'u8[65536]{0}', space=vmem, size = 0x10000, scoped, tag = 'input window, operand 1, single buffered']
    #allocation6 [shape = 's32[1]{0}', space=sflag, size = 0x4, scoped, tag = 'scoped memory for tpu_custom_call.1']
    #allocation7 [shape = 'u8[512]{0}', space=vmem, size = 0x400, scoped, tag = 'input window, operand 2, single buffered']
    #allocation8 [shape = 'u8[512]{0}', space=vmem, size = 0x400, scoped, tag = 'input window, operand 3, single buffered']
    #allocation9 [shape = 's32[1]{0}', space=sflag, size = 0x4, scoped, tag = 'scoped memory for tpu_custom_call.1']
    #allocation10 [shape = 'u8[131072]{0}', space=vmem, size = 0x20000, scoped, tag = 'input window, operand 4, single buffered']
    #allocation11 [shape = 'u8[262144]{0}', space=vmem, size = 0x40000, scoped, tag = 'input window, operand 6, single buffered']
    #allocation12 [shape = 's32[1]{0}', space=sflag, size = 0x4, scoped, tag = 'scoped memory for tpu_custom_call.1']
    #allocation13 [shape = 'u8[131072]{0}', space=vmem, size = 0x20000, scoped, tag = 'input window, operand 8, single buffered']
    #allocation14 [shape = 'u8[2048]{0}', space=vmem, size = 0x800, scoped, tag = 'output window, operand 0, single buffered']
    %15 = vsyncpa [#allocation3], 0
    %16 = vsyncpa [#allocation6], 0
    %17 = vsyncpa [#allocation9], 0
    %18 = vsyncpa [#allocation12], 0
    %19 = vsyncpa [#allocation4], 0
    // Predicated region
    $region2: #{tpu_custom_call.1} parent=1 // pred_check
      _
    $region3: #{tpu_custom_call.1} parent=1 // pred_check_branch
      %21 = sbr.rel (0) target = $region5
    $region4: #{tpu_custom_call.1} parent=1 // pred_region
      %23 = vsyncadd [#allocation3], 0
      %s25 = sshll.u32 %s0, 4
      %s26 = int_to_ptr.hbm [resolvable:$true] %s25
      %s27 = sshll.u32 [#allocation2], 4
      %s28 = int_to_ptr.vmem [resolvable:$true] %s27
      %30 = dma.hbm_to_vmem [thread:$0]  %s26, 64, %s28, [#allocation3]
    $region5: #{tpu_custom_call.1} parent=1 // pred_fallthru
      _
    // Predicated region
    $region6: #{tpu_custom_call.1} parent=1 // pred_check
      _
    $region7: #{tpu_custom_call.1} parent=1 // pred_check_branch
      %32 = sbr.rel (0) target = $region9
    $region8: #{tpu_custom_call.1} parent=1 // pred_region
      %34 = vsyncadd [#allocation6], 0
      %s35 = sshll.u32 %s1, 4
      %s36 = int_to_ptr.hbm [resolvable:$true] %s35
      %s37 = sshll.u32 [#allocation5], 4
      %s38 = int_to_ptr.vmem [resolvable:$true] %s37
      %43 = dma.hbm_to_vmem [thread:$0]  %s36, 2048, %s38, [#allocation6], 128, 128, 8
    $region9: #{tpu_custom_call.1} parent=1 // pred_fallthru
      _
    // Predicated region
    $region10: #{tpu_custom_call.1} parent=1 // pred_check
      _
    $region11: #{tpu_custom_call.1} parent=1 // pred_check_branch
      %45 = sbr.rel (0) target = $region13
    $region12: #{tpu_custom_call.1} parent=1 // pred_region
      %47 = vsyncadd [#allocation6], 0
      %s49 = sshll.u32 %s2, 4
      %s50 = int_to_ptr.hbm [resolvable:$true] %s49
      %s51 = sshll.u32 [#allocation7], 4
      %s52 = int_to_ptr.vmem [resolvable:$true] %s51
      %54 = dma.hbm_to_vmem [thread:$0]  %s50, 16, %s52, [#allocation6]
    $region13: #{tpu_custom_call.1} parent=1 // pred_fallthru
      _
    // Predicated region
    $region14: #{tpu_custom_call.1} parent=1 // pred_check
      _
    $region15: #{tpu_custom_call.1} parent=1 // pred_check_branch
      %56 = sbr.rel (0) target = $region17
    $region16: #{tpu_custom_call.1} parent=1 // pred_region
      %58 = vsyncadd [#allocation9], 0
      %s60 = sshll.u32 %s3, 4
      %s61 = int_to_ptr.hbm [resolvable:$true] %s60
      %s62 = sshll.u32 [#allocation8], 4
      %s63 = int_to_ptr.vmem [resolvable:$true] %s62
      %65 = dma.hbm_to_vmem [thread:$0]  %s61, 16, %s63, [#allocation9]
    $region17: #{tpu_custom_call.1} parent=1 // pred_fallthru
      _
    // Predicated region
    $region18: #{tpu_custom_call.1} parent=1 // pred_check
      _
    $region19: #{tpu_custom_call.1} parent=1 // pred_check_branch
      %67 = sbr.rel (0) target = $region21
    $region20: #{tpu_custom_call.1} parent=1 // pred_region
      %69 = vsyncadd [#allocation9], 0
      %s70 = sshll.u32 %s4, 4
      %s71 = int_to_ptr.hbm [resolvable:$true] %s70
      %s72 = sshll.u32 [#allocation10], 4
      %s73 = int_to_ptr.vmem [resolvable:$true] %s72
      %78 = dma.hbm_to_vmem [thread:$0]  %s71, 4096, %s73, [#allocation9], 256, 256, 16
    $region21: #{tpu_custom_call.1} parent=1 // pred_fallthru
      _
    // Predicated region
    $region22: #{tpu_custom_call.1} parent=1 // pred_check
      _
    $region23: #{tpu_custom_call.1} parent=1 // pred_check_branch
      %80 = sbr.rel (0) target = $region25
    $region24: #{tpu_custom_call.1} parent=1 // pred_region
      _
    $region25: #{tpu_custom_call.1} parent=1 // pred_fallthru
      _
    // Predicated region
    $region26: #{tpu_custom_call.1} parent=1 // pred_check
      _
    $region27: #{tpu_custom_call.1} parent=1 // pred_check_branch
      %82 = sbr.rel (0) target = $region29
    $region28: #{tpu_custom_call.1} parent=1 // pred_region
      %84 = vsyncadd [#allocation12], 0
      %s85 = sshll.u32 %s6, 4
      %s86 = int_to_ptr.hbm [resolvable:$true] %s85
      %s87 = sshll.u32 [#allocation11], 4
      %s88 = int_to_ptr.vmem [resolvable:$true] %s87
      %93 = dma.hbm_to_vmem [thread:$0]  %s86, 8192, %s88, [#allocation12], 256, 256, 16
    $region29: #{tpu_custom_call.1} parent=1 // pred_fallthru
      _
    // Predicated region
    $region30: #{tpu_custom_call.1} parent=1 // pred_check
      _
    $region31: #{tpu_custom_call.1} parent=1 // pred_check_branch
      %95 = sbr.rel (0) target = $region33
    $region32: #{tpu_custom_call.1} parent=1 // pred_region
      _
    $region33: #{tpu_custom_call.1} parent=1 // pred_fallthru
      _
    // Predicated region
    $region34: #{tpu_custom_call.1} parent=1 // pred_check
      _
    $region35: #{tpu_custom_call.1} parent=1 // pred_check_branch
      %97 = sbr.rel (0) target = $region37
    $region36: #{tpu_custom_call.1} parent=1 // pred_region
      %99 = vsyncadd [#allocation12], 0
      %s100 = sshll.u32 %s8, 4
      %s101 = int_to_ptr.hbm [resolvable:$true] %s100
      %s102 = sshll.u32 [#allocation13], 4
      %s103 = int_to_ptr.vmem [resolvable:$true] %s102
      %108 = dma.hbm_to_vmem [thread:$0]  %s101, 4096, %s103, [#allocation12], 128, 128, 8
    $region37: #{tpu_custom_call.1} parent=1 // pred_fallthru
      _
    // Predicated region
    $region38: #{tpu_custom_call.1} parent=1 // pred_check
      _
    $region39: #{tpu_custom_call.1} parent=1 // pred_check_branch
      %110 = sbr.rel (0) target = $region41
    $region40: #{tpu_custom_call.1} parent=1 // pred_region
      _
    $region41: #{tpu_custom_call.1} parent=1 // pred_fallthru
      _
    // Predicated region
    $region42: #{tpu_custom_call.1} parent=1 // pred_check
      _
    $region43: #{tpu_custom_call.1} parent=1 // pred_check_branch
      %112 = sbr.rel (0) target = $region45
    $region44: #{tpu_custom_call.1} parent=1 // pred_region
      %114 = dma.done [#allocation3], 64
    $region45: #{tpu_custom_call.1} parent=1 // pred_fallthru
      _
    // Predicated region
    $region46: #{tpu_custom_call.1} parent=1 // pred_check
      _
    $region47: #{tpu_custom_call.1} parent=1 // pred_check_branch
      %116 = sbr.rel (0) target = $region49
    $region48: #{tpu_custom_call.1} parent=1 // pred_region
      %118 = dma.done [#allocation6], 2048
    $region49: #{tpu_custom_call.1} parent=1 // pred_fallthru
      _
    // Predicated region
    $region50: #{tpu_custom_call.1} parent=1 // pred_check
      _
    $region51: #{tpu_custom_call.1} parent=1 // pred_check_branch
      %120 = sbr.rel (0) target = $region53
    $region52: #{tpu_custom_call.1} parent=1 // pred_region
      %122 = dma.done [#allocation6], 16
    $region53: #{tpu_custom_call.1} parent=1 // pred_fallthru
      _
    // Predicated region
    $region54: #{tpu_custom_call.1} parent=1 // pred_check
      _
    $region55: #{tpu_custom_call.1} parent=1 // pred_check_branch
      %124 = sbr.rel (0) target = $region57
    $region56: #{tpu_custom_call.1} parent=1 // pred_region
      %126 = dma.done [#allocation9], 16
    $region57: #{tpu_custom_call.1} parent=1 // pred_fallthru
      _
    // Predicated region
    $region58: #{tpu_custom_call.1} parent=1 // pred_check
      _
    $region59: #{tpu_custom_call.1} parent=1 // pred_check_branch
      %128 = sbr.rel (0) target = $region61
    $region60: #{tpu_custom_call.1} parent=1 // pred_region
      %130 = dma.done [#allocation9], 4096
    $region61: #{tpu_custom_call.1} parent=1 // pred_fallthru
      _
    // Predicated region
    $region62: #{tpu_custom_call.1} parent=1 // pred_check
      _
    $region63: #{tpu_custom_call.1} parent=1 // pred_check_branch
      %132 = sbr.rel (0) target = $region65
    $region64: #{tpu_custom_call.1} parent=1 // pred_region
      %134 = dma.done [#allocation12], 8192
    $region65: #{tpu_custom_call.1} parent=1 // pred_fallthru
      _
    // Predicated region
    $region66: #{tpu_custom_call.1} parent=1 // pred_check
      _
    $region67: #{tpu_custom_call.1} parent=1 // pred_check_branch
      %136 = sbr.rel (0) target = $region69
    $region68: #{tpu_custom_call.1} parent=1 // pred_region
      %138 = dma.done [#allocation12], 4096
    $region69: #{tpu_custom_call.1} parent=1 // pred_fallthru
      _
    %v139 = vld [vmem:[#allocation2] sm:$0xf]
    %v140 = vld [vmem:[#allocation5] sm:$0xff]
    %v141 = vld [vmem:[#allocation5 + $0x8] sm:$0xff]
    %v142 = vld [vmem:[#allocation5 + $0x10] sm:$0xff]
    %v143 = vld [vmem:[#allocation5 + $0x18] sm:$0xff]
    %v144 = vld [vmem:[#allocation5 + $0x20] sm:$0xff]
    %v145 = vld [vmem:[#allocation5 + $0x28] sm:$0xff]
    %v146 = vld [vmem:[#allocation5 + $0x30] sm:$0xff]
    %v147 = vld [vmem:[#allocation5 + $0x38] sm:$0xff]
    %v148 = vld [vmem:[#allocation5 + $0x40] sm:$0xff]
    %v149 = vld [vmem:[#allocation5 + $0x48] sm:$0xff]
    %v150 = vld [vmem:[#allocation5 + $0x50] sm:$0xff]
    %v151 = vld [vmem:[#allocation5 + $0x58] sm:$0xff]
    %v152 = vld [vmem:[#allocation5 + $0x60] sm:$0xff]
    %v153 = vld [vmem:[#allocation5 + $0x68] sm:$0xff]
    %v154 = vld [vmem:[#allocation5 + $0x70] sm:$0xff]
    %v155 = vld [vmem:[#allocation5 + $0x78] sm:$0xff]
    %v156 = vld [vmem:[#allocation7] sm:$0x1]
    %v157 = vld [vmem:[#allocation8] sm:$0x1]
    %158 = vmatpush.msra.mxu0 %v155
    %159 = vmatpush.msra.mxu0 %v154
    %160 = vmatpush.msra.mxu0 %v153
    %161 = vmatpush.msra.mxu0 %v152
    %162 = vmatpush.msra.mxu0 %v151
    %163 = vmatpush.msra.mxu0 %v150
    %164 = vmatpush.msra.mxu0 %v149
    %165 = vmatpush.msra.mxu0 %v148
    %166 = vmatpush.msra.mxu0 %v147
    %167 = vmatpush.msra.mxu0 %v146
    %168 = vmatpush.msra.mxu0 %v145
    %169 = vmatpush.msra.mxu0 %v144
    %170 = vmatpush.msra.mxu0 %v143
    %171 = vmatpush.msra.mxu0 %v142
    %172 = vmatpush.msra.mxu0 %v141
    %173 = vmatpush.msra.mxu0 %v140
    %174 = vmatmul.f32.gmra.mxu0 %v139
    %v175 = vpop.f32.mrf.mxu0
    %v176 = vadd.f32 0.0, %v175
    %177 = vdwg.mxu0
    %v178 = vsub.f32 %v139, %v176
    %v179 = vmul.f32 %v178, %v178
    %180 = vmatpush.msra.mxu0 %v155
    %181 = vmatpush.msra.mxu0 %v154
    %182 = vmatpush.msra.mxu0 %v153
    %183 = vmatpush.msra.mxu0 %v152
    %184 = vmatpush.msra.mxu0 %v151
    %185 = vmatpush.msra.mxu0 %v150
    %186 = vmatpush.msra.mxu0 %v149
    %187 = vmatpush.msra.mxu0 %v148
    %188 = vmatpush.msra.mxu0 %v147
    %189 = vmatpush.msra.mxu0 %v146
    %190 = vmatpush.msra.mxu0 %v145
    %191 = vmatpush.msra.mxu0 %v144
    %192 = vmatpush.msra.mxu0 %v143
    %193 = vmatpush.msra.mxu0 %v142
    %194 = vmatpush.msra.mxu0 %v141
    %195 = vmatpush.msra.mxu0 %v140
    %196 = vmatmul.f32.gmra.mxu0 %v179
    %v197 = vpop.f32.mrf.mxu0
    %v198 = vadd.f32 1e-05, %v197
    %199 = vdwg.mxu0
    %v200 = vrsqrt.pop %v198
    %v201 = vmul.f32 %v200, %v198
    %v202 = vmul.f32 %v201, %v200
    %v203 = vmul.f32 0.5, %v202
    %v204 = vsub.f32 1.5, %v203
    %v205 = vmul.f32 %v200, %v204
    %vm206 = vweird.f32 %v198
    %vm207 = vweird.f32 %v200
    %vm208 = vmor %vm206, %vm207
    %v209 = vsel %vm208, %v200, %v205
    %v210 = vmul.f32 %v178, %v209
    %v212 = vperm.slane %v156, 0
    %v214 = vmul.f32 %v210, %v212
    %v216 = vperm.slane %v157, 0
    %v218 = vadd.f32 %v214, %v216
    %v219 = vld [vmem:[#allocation10] sm:$0xff]
    %v220 = vld [vmem:[#allocation10 + $0x8] sm:$0xff]
    %v221 = vld [vmem:[#allocation10 + $0x10] sm:$0xff]
    %v222 = vld [vmem:[#allocation10 + $0x18] sm:$0xff]
    %v223 = vld [vmem:[#allocation10 + $0x20] sm:$0xff]
    %v224 = vld [vmem:[#allocation10 + $0x28] sm:$0xff]
    %v225 = vld [vmem:[#allocation10 + $0x30] sm:$0xff]
    %v226 = vld [vmem:[#allocation10 + $0x38] sm:$0xff]
    %v227 = vld [vmem:[#allocation10 + $0x40] sm:$0xff]
    %v228 = vld [vmem:[#allocation10 + $0x48] sm:$0xff]
    %v229 = vld [vmem:[#allocation10 + $0x50] sm:$0xff]
    %v230 = vld [vmem:[#allocation10 + $0x58] sm:$0xff]
    %v231 = vld [vmem:[#allocation10 + $0x60] sm:$0xff]
    %v232 = vld [vmem:[#allocation10 + $0x68] sm:$0xff]
    %v233 = vld [vmem:[#allocation10 + $0x70] sm:$0xff]
    %v234 = vld [vmem:[#allocation10 + $0x78] sm:$0xff]
    %v235 = vld [vmem:[#allocation10 + $0x80] sm:$0xff]
    %v236 = vld [vmem:[#allocation10 + $0x88] sm:$0xff]
    %v237 = vld [vmem:[#allocation10 + $0x90] sm:$0xff]
    %v238 = vld [vmem:[#allocation10 + $0x98] sm:$0xff]
    %v239 = vld [vmem:[#allocation10 + $0xa0] sm:$0xff]
    %v240 = vld [vmem:[#allocation10 + $0xa8] sm:$0xff]
    %v241 = vld [vmem:[#allocation10 + $0xb0] sm:$0xff]
    %v242 = vld [vmem:[#allocation10 + $0xb8] sm:$0xff]
    %v243 = vld [vmem:[#allocation10 + $0xc0] sm:$0xff]
    %v244 = vld [vmem:[#allocation10 + $0xc8] sm:$0xff]
    %v245 = vld [vmem:[#allocation10 + $0xd0] sm:$0xff]
    %v246 = vld [vmem:[#allocation10 + $0xd8] sm:$0xff]
    %v247 = vld [vmem:[#allocation10 + $0xe0] sm:$0xff]
    %v248 = vld [vmem:[#allocation10 + $0xe8] sm:$0xff]
    %v249 = vld [vmem:[#allocation10 + $0xf0] sm:$0xff]
    %v250 = vld [vmem:[#allocation10 + $0xf8] sm:$0xff]
    %v251 = vld [vmem:[%s5] sm:$0x3]
    %v253 = vperm.slane %v251, 0
    %v254 = vperm.slane %v251, 1
    %257 = vmatpush.msra.mxu0 %v249
    %258 = vmatpush.msra.mxu0 %v247
    %259 = vmatpush.msra.mxu0 %v245
    %260 = vmatpush.msra.mxu0 %v243
    %261 = vmatpush.msra.mxu0 %v241
    %262 = vmatpush.msra.mxu0 %v239
    %263 = vmatpush.msra.mxu0 %v237
    %264 = vmatpush.msra.mxu0 %v235
    %265 = vmatpush.msra.mxu0 %v233
    %266 = vmatpush.msra.mxu0 %v231
    %267 = vmatpush.msra.mxu0 %v229
    %268 = vmatpush.msra.mxu0 %v227
    %269 = vmatpush.msra.mxu0 %v225
    %270 = vmatpush.msra.mxu0 %v223
    %271 = vmatpush.msra.mxu0 %v221
    %272 = vmatpush.msra.mxu0 %v219
    %273 = vmatmul.f32.gmra.mxu0 %v218
    %v274 = vpop.f32.mrf.mxu0
    %v275 = vadd.f32 %v253, %v274
    %276 = vdwg.mxu0
    %277 = vmatpush.msra.mxu0 %v250
    %278 = vmatpush.msra.mxu0 %v248
    %279 = vmatpush.msra.mxu0 %v246
    %280 = vmatpush.msra.mxu0 %v244
    %281 = vmatpush.msra.mxu0 %v242
    %282 = vmatpush.msra.mxu0 %v240
    %283 = vmatpush.msra.mxu0 %v238
    %284 = vmatpush.msra.mxu0 %v236
    %285 = vmatpush.msra.mxu0 %v234
    %286 = vmatpush.msra.mxu0 %v232
    %287 = vmatpush.msra.mxu0 %v230
    %288 = vmatpush.msra.mxu0 %v228
    %289 = vmatpush.msra.mxu0 %v226
    %290 = vmatpush.msra.mxu0 %v224
    %291 = vmatpush.msra.mxu0 %v222
    %292 = vmatpush.msra.mxu0 %v220
    %293 = vmatmul.f32.gmra.mxu0 %v218
    %v294 = vpop.f32.mrf.mxu0
    %v295 = vadd.f32 %v254, %v294
    %296 = vdwg.mxu0
    %v297 = vmax.f32 %v275, 0.0
    %v298 = vmax.f32 %v295, 0.0
    %v299 = vld [vmem:[#allocation11] sm:$0xff]
    %v300 = vld [vmem:[#allocation11 + $0x8] sm:$0xff]
    %v301 = vld [vmem:[#allocation11 + $0x10] sm:$0xff]
    %v302 = vld [vmem:[#allocation11 + $0x18] sm:$0xff]
    %v303 = vld [vmem:[#allocation11 + $0x20] sm:$0xff]
    %v304 = vld [vmem:[#allocation11 + $0x28] sm:$0xff]
    %v305 = vld [vmem:[#allocation11 + $0x30] sm:$0xff]
    %v306 = vld [vmem:[#allocation11 + $0x38] sm:$0xff]
    %v307 = vld [vmem:[#allocation11 + $0x40] sm:$0xff]
    %v308 = vld [vmem:[#allocation11 + $0x48] sm:$0xff]
    %v309 = vld [vmem:[#allocation11 + $0x50] sm:$0xff]
    %v310 = vld [vmem:[#allocation11 + $0x58] sm:$0xff]
    %v311 = vld [vmem:[#allocation11 + $0x60] sm:$0xff]
    %v312 = vld [vmem:[#allocation11 + $0x68] sm:$0xff]
    %v313 = vld [vmem:[#allocation11 + $0x70] sm:$0xff]
    %v314 = vld [vmem:[#allocation11 + $0x78] sm:$0xff]
    %v315 = vld [vmem:[#allocation11 + $0x80] sm:$0xff]
    %v316 = vld [vmem:[#allocation11 + $0x88] sm:$0xff]
    %v317 = vld [vmem:[#allocation11 + $0x90] sm:$0xff]
    %v318 = vld [vmem:[#allocation11 + $0x98] sm:$0xff]
    %v319 = vld [vmem:[#allocation11 + $0xa0] sm:$0xff]
    %v320 = vld [vmem:[#allocation11 + $0xa8] sm:$0xff]
    %v321 = vld [vmem:[#allocation11 + $0xb0] sm:$0xff]
    %v322 = vld [vmem:[#allocation11 + $0xb8] sm:$0xff]
    %v323 = vld [vmem:[#allocation11 + $0xc0] sm:$0xff]
    %v324 = vld [vmem:[#allocation11 + $0xc8] sm:$0xff]
    %v325 = vld [vmem:[#allocation11 + $0xd0] sm:$0xff]
    %v326 = vld [vmem:[#allocation11 + $0xd8] sm:$0xff]
    %v327 = vld [vmem:[#allocation11 + $0xe0] sm:$0xff]
    %v328 = vld [vmem:[#allocation11 + $0xe8] sm:$0xff]
    %v329 = vld [vmem:[#allocation11 + $0xf0] sm:$0xff]
    %v330 = vld [vmem:[#allocation11 + $0xf8] sm:$0xff]
    %v331 = vld [vmem:[#allocation11 + $0x100] sm:$0xff]
    %v332 = vld [vmem:[#allocation11 + $0x108] sm:$0xff]
    %v333 = vld [vmem:[#allocation11 + $0x110] sm:$0xff]
    %v334 = vld [vmem:[#allocation11 + $0x118] sm:$0xff]
    %v335 = vld [vmem:[#allocation11 + $0x120] sm:$0xff]
    %v336 = vld [vmem:[#allocation11 + $0x128] sm:$0xff]
    %v337 = vld [vmem:[#allocation11 + $0x130] sm:$0xff]
    %v338 = vld [vmem:[#allocation11 + $0x138] sm:$0xff]
    %v339 = vld [vmem:[#allocation11 + $0x140] sm:$0xff]
    %v340 = vld [vmem:[#allocation11 + $0x148] sm:$0xff]
    %v341 = vld [vmem:[#allocation11 + $0x150] sm:$0xff]
    %v342 = vld [vmem:[#allocation11 + $0x158] sm:$0xff]
    %v343 = vld [vmem:[#allocation11 + $0x160] sm:$0xff]
    %v344 = vld [vmem:[#allocation11 + $0x168] sm:$0xff]
    %v345 = vld [vmem:[#allocation11 + $0x170] sm:$0xff]
    %v346 = vld [vmem:[#allocation11 + $0x178] sm:$0xff]
    %v347 = vld [vmem:[#allocation11 + $0x180] sm:$0xff]
    %v348 = vld [vmem:[#allocation11 + $0x188] sm:$0xff]
    %v349 = vld [vmem:[#allocation11 + $0x190] sm:$0xff]
    %v350 = vld [vmem:[#allocation11 + $0x198] sm:$0xff]
    %v351 = vld [vmem:[#allocation11 + $0x1a0] sm:$0xff]
    %v352 = vld [vmem:[#allocation11 + $0x1a8] sm:$0xff]
    %v353 = vld [vmem:[#allocation11 + $0x1b0] sm:$0xff]
    %v354 = vld [vmem:[#allocation11 + $0x1b8] sm:$0xff]
    %v355 = vld [vmem:[#allocation11 + $0x1c0] sm:$0xff]
    %v356 = vld [vmem:[#allocation11 + $0x1c8] sm:$0xff]
    %v357 = vld [vmem:[#allocation11 + $0x1d0] sm:$0xff]
    %v358 = vld [vmem:[#allocation11 + $0x1d8] sm:$0xff]
    %v359 = vld [vmem:[#allocation11 + $0x1e0] sm:$0xff]
    %v360 = vld [vmem:[#allocation11 + $0x1e8] sm:$0xff]
    %v361 = vld [vmem:[#allocation11 + $0x1f0] sm:$0xff]
    %v362 = vld [vmem:[#allocation11 + $0x1f8] sm:$0xff]
    %v363 = vld [vmem:[%s7] sm:$0x3]
    %v365 = vperm.slane %v363, 0
    %v366 = vperm.slane %v363, 1
    %369 = vmatpush.msra.mxu0 %v329
    %370 = vmatpush.msra.mxu0 %v327
    %371 = vmatpush.msra.mxu0 %v325
    %372 = vmatpush.msra.mxu0 %v323
    %373 = vmatpush.msra.mxu0 %v321
    %374 = vmatpush.msra.mxu0 %v319
    %375 = vmatpush.msra.mxu0 %v317
    %376 = vmatpush.msra.mxu0 %v315
    %377 = vmatpush.msra.mxu0 %v313
    %378 = vmatpush.msra.mxu0 %v311
    %379 = vmatpush.msra.mxu0 %v309
    %380 = vmatpush.msra.mxu0 %v307
    %381 = vmatpush.msra.mxu0 %v305
    %382 = vmatpush.msra.mxu0 %v303
    %383 = vmatpush.msra.mxu0 %v301
    %384 = vmatpush.msra.mxu0 %v299
    %385 = vmatmul.f32.gmra.mxu0 %v297
    %v386 = vpop.f32.mrf.mxu0
    %v387 = vadd.f32 %v365, %v386
    %388 = vdwg.mxu0
    %389 = vmatpush.msra.mxu0 %v361
    %390 = vmatpush.msra.mxu0 %v359
    %391 = vmatpush.msra.mxu0 %v357
    %392 = vmatpush.msra.mxu0 %v355
    %393 = vmatpush.msra.mxu0 %v353
    %394 = vmatpush.msra.mxu0 %v351
    %395 = vmatpush.msra.mxu0 %v349
    %396 = vmatpush.msra.mxu0 %v347
    %397 = vmatpush.msra.mxu0 %v345
    %398 = vmatpush.msra.mxu0 %v343
    %399 = vmatpush.msra.mxu0 %v341
    %400 = vmatpush.msra.mxu0 %v339
    %401 = vmatpush.msra.mxu0 %v337
    %402 = vmatpush.msra.mxu0 %v335
    %403 = vmatpush.msra.mxu0 %v333
    %404 = vmatpush.msra.mxu0 %v331
    %405 = vmatmul.f32.gmra.mxu0 %v298
    %v406 = vpop.f32.mrf.mxu0
    %v407 = vadd.f32 %v387, %v406
    %408 = vdwg.mxu0
    %409 = vmatpush.msra.mxu0 %v330
    %410 = vmatpush.msra.mxu0 %v328
    %411 = vmatpush.msra.mxu0 %v326
    %412 = vmatpush.msra.mxu0 %v324
    %413 = vmatpush.msra.mxu0 %v322
    %414 = vmatpush.msra.mxu0 %v320
    %415 = vmatpush.msra.mxu0 %v318
    %416 = vmatpush.msra.mxu0 %v316
    %417 = vmatpush.msra.mxu0 %v314
    %418 = vmatpush.msra.mxu0 %v312
    %419 = vmatpush.msra.mxu0 %v310
    %420 = vmatpush.msra.mxu0 %v308
    %421 = vmatpush.msra.mxu0 %v306
    %422 = vmatpush.msra.mxu0 %v304
    %423 = vmatpush.msra.mxu0 %v302
    %424 = vmatpush.msra.mxu0 %v300
    %425 = vmatmul.f32.gmra.mxu0 %v297
    %v426 = vpop.f32.mrf.mxu0
    %v427 = vadd.f32 %v366, %v426
    %428 = vdwg.mxu0
    %429 = vmatpush.msra.mxu0 %v362
    %430 = vmatpush.msra.mxu0 %v360
    %431 = vmatpush.msra.mxu0 %v358
    %432 = vmatpush.msra.mxu0 %v356
    %433 = vmatpush.msra.mxu0 %v354
    %434 = vmatpush.msra.mxu0 %v352
    %435 = vmatpush.msra.mxu0 %v350
    %436 = vmatpush.msra.mxu0 %v348
    %437 = vmatpush.msra.mxu0 %v346
    %438 = vmatpush.msra.mxu0 %v344
    %439 = vmatpush.msra.mxu0 %v342
    %440 = vmatpush.msra.mxu0 %v340
    %441 = vmatpush.msra.mxu0 %v338
    %442 = vmatpush.msra.mxu0 %v336
    %443 = vmatpush.msra.mxu0 %v334
    %444 = vmatpush.msra.mxu0 %v332
    %445 = vmatmul.f32.gmra.mxu0 %v298
    %v446 = vpop.f32.mrf.mxu0
    %v447 = vadd.f32 %v427, %v446
    %448 = vdwg.mxu0
    %v449 = vmax.f32 %v407, 0.0
    %v450 = vmax.f32 %v447, 0.0
    %v451 = vld [vmem:[#allocation13] sm:$0xff]
    %v452 = vld [vmem:[#allocation13 + $0x8] sm:$0xff]
    %v453 = vld [vmem:[#allocation13 + $0x10] sm:$0xff]
    %v454 = vld [vmem:[#allocation13 + $0x18] sm:$0xff]
    %v455 = vld [vmem:[#allocation13 + $0x20] sm:$0xff]
    %v456 = vld [vmem:[#allocation13 + $0x28] sm:$0xff]
    %v457 = vld [vmem:[#allocation13 + $0x30] sm:$0xff]
    %v458 = vld [vmem:[#allocation13 + $0x38] sm:$0xff]
    %v459 = vld [vmem:[#allocation13 + $0x40] sm:$0xff]
    %v460 = vld [vmem:[#allocation13 + $0x48] sm:$0xff]
    %v461 = vld [vmem:[#allocation13 + $0x50] sm:$0xff]
    %v462 = vld [vmem:[#allocation13 + $0x58] sm:$0xff]
    %v463 = vld [vmem:[#allocation13 + $0x60] sm:$0xff]
    %v464 = vld [vmem:[#allocation13 + $0x68] sm:$0xff]
    %v465 = vld [vmem:[#allocation13 + $0x70] sm:$0xff]
    %v466 = vld [vmem:[#allocation13 + $0x78] sm:$0xff]
    %v467 = vld [vmem:[#allocation13 + $0x80] sm:$0xff]
    %v468 = vld [vmem:[#allocation13 + $0x88] sm:$0xff]
    %v469 = vld [vmem:[#allocation13 + $0x90] sm:$0xff]
    %v470 = vld [vmem:[#allocation13 + $0x98] sm:$0xff]
    %v471 = vld [vmem:[#allocation13 + $0xa0] sm:$0xff]
    %v472 = vld [vmem:[#allocation13 + $0xa8] sm:$0xff]
    %v473 = vld [vmem:[#allocation13 + $0xb0] sm:$0xff]
    %v474 = vld [vmem:[#allocation13 + $0xb8] sm:$0xff]
    %v475 = vld [vmem:[#allocation13 + $0xc0] sm:$0xff]
    %v476 = vld [vmem:[#allocation13 + $0xc8] sm:$0xff]
    %v477 = vld [vmem:[#allocation13 + $0xd0] sm:$0xff]
    %v478 = vld [vmem:[#allocation13 + $0xd8] sm:$0xff]
    %v479 = vld [vmem:[#allocation13 + $0xe0] sm:$0xff]
    %v480 = vld [vmem:[#allocation13 + $0xe8] sm:$0xff]
    %v481 = vld [vmem:[#allocation13 + $0xf0] sm:$0xff]
    %v482 = vld [vmem:[#allocation13 + $0xf8] sm:$0xff]
    %v483 = vld [vmem:[%s9] sm:$0x1]
    %v485 = vperm.slane %v483, 0
    %487 = vmatpush.msra.mxu0 %v466
    %488 = vmatpush.msra.mxu0 %v465
    %489 = vmatpush.msra.mxu0 %v464
    %490 = vmatpush.msra.mxu0 %v463
    %491 = vmatpush.msra.mxu0 %v462
    %492 = vmatpush.msra.mxu0 %v461
    %493 = vmatpush.msra.mxu0 %v460
    %494 = vmatpush.msra.mxu0 %v459
    %495 = vmatpush.msra.mxu0 %v458
    %496 = vmatpush.msra.mxu0 %v457
    %497 = vmatpush.msra.mxu0 %v456
    %498 = vmatpush.msra.mxu0 %v455
    %499 = vmatpush.msra.mxu0 %v454
    %500 = vmatpush.msra.mxu0 %v453
    %501 = vmatpush.msra.mxu0 %v452
    %502 = vmatpush.msra.mxu0 %v451
    %503 = vmatmul.f32.gmra.mxu0 %v449
    %v504 = vpop.f32.mrf.mxu0
    %v505 = vadd.f32 %v485, %v504
    %506 = vdwg.mxu0
    %507 = vmatpush.msra.mxu0 %v482
    %508 = vmatpush.msra.mxu0 %v481
    %509 = vmatpush.msra.mxu0 %v480
    %510 = vmatpush.msra.mxu0 %v479
    %511 = vmatpush.msra.mxu0 %v478
    %512 = vmatpush.msra.mxu0 %v477
    %513 = vmatpush.msra.mxu0 %v476
    %514 = vmatpush.msra.mxu0 %v475
    %515 = vmatpush.msra.mxu0 %v474
    %516 = vmatpush.msra.mxu0 %v473
    %517 = vmatpush.msra.mxu0 %v472
    %518 = vmatpush.msra.mxu0 %v471
    %519 = vmatpush.msra.mxu0 %v470
    %520 = vmatpush.msra.mxu0 %v469
    %521 = vmatpush.msra.mxu0 %v468
    %522 = vmatpush.msra.mxu0 %v467
    %523 = vmatmul.f32.gmra.mxu0 %v450
    %v524 = vpop.f32.mrf.mxu0
    %v525 = vadd.f32 %v505, %v524
    %526 = vdwg.mxu0
    %v527 = vadd.f32 %v525, %v139
    %528 = vst [vmem:[#allocation14] sm:$0xf] %v527
    // Predicated region
    $region70: #{tpu_custom_call.1} parent=1 // pred_check
      _
    $region71: #{tpu_custom_call.1} parent=1 // pred_check_branch
      %530 = sbr.rel (0) target = $region73
    $region72: #{tpu_custom_call.1} parent=1 // pred_region
      %532 = vsyncadd [#allocation4], 0
      %s534 = sshll.u32 [#allocation14], 4
      %s535 = int_to_ptr.vmem [resolvable:$true] %s534
      %s536 = sshll.u32 %s10, 4
      %s537 = int_to_ptr.hbm [resolvable:$true] %s536
      %539 = dma.vmem_to_hbm [thread:$0]  %s535, 64, %s537, [#allocation4]
    $region73: #{tpu_custom_call.1} parent=1 // pred_fallthru
      _
    // Predicated region
    $region74: #{tpu_custom_call.1} parent=1 // pred_check
      _
    $region75: #{tpu_custom_call.1} parent=1 // pred_check_branch
      %541 = sbr.rel (0) target = $region77
    $region76: #{tpu_custom_call.1} parent=1 // pred_region
      %543 = dma.done [#allocation4], 64
    $region77: #{tpu_custom_call.1} parent=1 // pred_fallthru
      _
    %544 = vsyncpa [#allocation3], 1
    %545 = vsyncpa [#allocation6], 1
    %546 = vsyncpa [#allocation9], 1
    %547 = vsyncpa [#allocation12], 1
    %548 = vsyncpa [#allocation4], 1

</llo_original>
